<compile_context>
chip_gen: v5e
topology: v5e:2x2
jax: 0.10.0
libtpu: 0.0.40
codegen_flags: <defaults>
</compile_context>

<pallas_src>
import functools
import math

import jax
import jax.numpy as jnp
from jax import lax
from jax.experimental import pallas as pl
from jax.experimental.pallas import tpu as pltpu


# ----------------------------------------------------------------------------
# Buffer construction (mirrors the PyTorch __init__)
# ----------------------------------------------------------------------------
def make_pos_embed(max_length: int, embed_size: int, embed_first: bool = False,
                   dtype=jnp.float32):
    p = jnp.arange(max_length, dtype=jnp.float32)[:, None]                     # (L, 1)
    div_term = jnp.exp(
        jnp.arange(0, embed_size, 2, dtype=jnp.float32)
        * (-math.log(10000.0) / embed_size)
    )                                                                          # (E/2,)
    pe = jnp.zeros((1, max_length, embed_size), dtype=jnp.float32)
    pe = pe.at[0, :, 0::2].set(jnp.sin(p * div_term))
    pe = pe.at[0, :, 1::2].set(jnp.cos(p * div_term))
    if embed_first:
        # PyTorch uses .view(): a reinterpreting reshape, NOT a transpose.
        pe = pe.reshape(1, embed_size, max_length)
    return pe.astype(dtype)


# ----------------------------------------------------------------------------
# Pallas kernels (operate on the lane-dense 2-D view)
# ----------------------------------------------------------------------------
def _pe_eval_kernel(x_ref, pe_ref, o_ref):
    # eval mode: dropout is the identity
    o_ref[...] = x_ref[...] + pe_ref[...]          # (R, C) + (1, C) broadcast


def _pe_train_kernel(seed_ref, x_ref, pe_ref, o_ref, *, p_drop: float, n_cols: int):
    y = x_ref[...] + pe_ref[...]
    R, C = y.shape
    # Global element index of each entry in this tile.
    row0 = pl.program_id(1) * R        # grid = (col_blocks, row_blocks)
    col0 = pl.program_id(0) * C
    rows = lax.broadcasted_iota(jnp.int32, (R, C), 0) + row0
    cols = lax.broadcasted_iota(jnp.int32, (R, C), 1) + col0
    idx = (rows * jnp.int32(n_cols) + cols).astype(jnp.uint32)

    # Counter-based hash (lowbias32) mixed with the seed -> 32 uniform bits/elem.
    h = idx ^ seed_ref[0].astype(jnp.uint32)
    h = (h ^ (h >> 16)) * jnp.uint32(0x7FEB352D)
    h = (h ^ (h >> 15)) * jnp.uint32(0x846CA68B)
    h = h ^ (h >> 16)

    # Integer-threshold keep mask: top 24 bits compared against round(p*2^24).
    r24 = (h >> 8).astype(jnp.int32)                      # in [0, 2^24)
    thr = jnp.int32(int(round(p_drop * (1 << 24))))
    keep = r24 >= thr
    scale = jnp.asarray(1.0 / (1.0 - p_drop), dtype=y.dtype)
    o_ref[...] = jnp.where(keep, y * scale, jnp.zeros_like(y))


# ----------------------------------------------------------------------------
# Tiling helpers
# ----------------------------------------------------------------------------
def _pick_tile(n: int, quantum: int, target: int) -> int:
    """Largest multiple of `quantum` that divides n and is <= target.
    Falls back to the full dimension (always a legal block)."""
    if n <= target or n % quantum != 0:
        return n
    start = target - (target % quantum)
    for c in range(start, quantum - 1, -quantum):
        if n % c == 0:
            return c
    return n


# ----------------------------------------------------------------------------
# Wrapper
# ----------------------------------------------------------------------------
def eeg_positional_encoder(x, pos_embed, *, training: bool = False, seed: int = 0,
                           p_drop: float = 0.2, donate_x: bool = False):
    """x: (B, D1, D2); pos_embed: (1, D1, D2). Returns same shape/dtype as x."""
    B, D1, D2 = x.shape
    assert pos_embed.shape == (1, D1, D2), "pos_embed must broadcast against x"
    N = D1 * D2

    # Lane-dense 2-D view; PE cast once to x's dtype (bf16 inputs halve HBM traffic).
    x2 = x.reshape(B, N)
    pe2 = pos_embed.reshape(1, N).astype(x.dtype)

    # Tiles: <= 2048 lanes x <= 256 rows (f32 <= 2 MiB/buffer) -> fits v5e's 16 MiB
    # scoped VMEM and v7x's 64 MiB physical VMEM with double-buffering.
    col_blk = _pick_tile(N, 128, 2048)
    row_blk = _pick_tile(B, 8, 256)
    n_col_blocks = pl.cdiv(N, col_blk)
    n_row_blocks = pl.cdiv(B, row_blk)
    # Inner (row/batch) axis keeps the PE block index constant -> PE not re-fetched.
    grid = (n_col_blocks, n_row_blocks)

    x_spec = pl.BlockSpec((row_blk, col_blk), lambda j, i: (i, j))
    pe_spec = pl.BlockSpec((1, col_blk), lambda j, i: (0, j))
    out_spec = pl.BlockSpec((row_blk, col_blk), lambda j, i: (i, j))
    out_shape = jax.ShapeDtypeStruct((B, N), x.dtype)

    compiler_params = pltpu.CompilerParams(
        dimension_semantics=("parallel", "parallel"),   # shards across v7x's 2 TCs
        vmem_limit_bytes=32 * 1024 * 1024,
    )

    if not training:
        aliases = {0: 0} if donate_x else {}
        y2 = pl.pallas_call(
            _pe_eval_kernel,
            grid=grid,
            in_specs=[x_spec, pe_spec],
            out_specs=out_spec,
            out_shape=out_shape,
            compiler_params=compiler_params,
            input_output_aliases=aliases,
        )(x2, pe2)
    else:
        seed_arr = jnp.asarray([seed], dtype=jnp.int32)
        kernel = functools.partial(_pe_train_kernel, p_drop=p_drop, n_cols=N)
        aliases = {1: 0} if donate_x else {}
        y2 = pl.pallas_call(
            kernel,
            grid=grid,
            in_specs=[
                pl.BlockSpec(memory_space=pltpu.MemorySpace.SMEM),   # seed scalar
                x_spec,
                pe_spec,
            ],
            out_specs=out_spec,
            out_shape=out_shape,
            compiler_params=compiler_params,
            input_output_aliases=aliases,
        )(seed_arr, x2, pe2)

    return y2.reshape(B, D1, D2)


# ----------------------------------------------------------------------------
# Demo / self-check
# ----------------------------------------------------------------------------
if __name__ == "__main__":
    # Small shapes consistent with the module: batch=2, max_length(seq)=8, embed=32.
    B, L, E = 2, 8, 32
    key = jax.random.PRNGKey(0)
    x = jax.random.normal(key, (B, L, E), dtype=jnp.float32)

    pe = make_pos_embed(max_length=L, embed_size=E, embed_first=False)

    # Eval mode (dropout == identity): verify against the plain-JAX reference.
    y_eval = jax.block_until_ready(eeg_positional_encoder(x, pe, training=False))
    ref = x + pe
    assert jnp.allclose(y_eval, ref, atol=1e-6, rtol=1e-6), "eval-mode mismatch"

    # Training mode: inverted dropout (p=0.2, rescale 1/0.8), deterministic seed.
    y_train = jax.block_until_ready(
        eeg_positional_encoder(x, pe, training=True, seed=0))
    # Every output element is either 0 (dropped) or (x+pe)/0.8 (kept & rescaled).
    ok = jnp.all(
        jnp.isclose(y_train, 0.0, atol=1e-6)
        | jnp.isclose(y_train, ref / 0.8, atol=1e-5, rtol=1e-5)
    )
    assert bool(ok), "train-mode dropout semantics violated"
    drop_frac = float(jnp.mean((y_train == 0.0).astype(jnp.float32)))
    assert 0.05 < drop_frac < 0.45, f"drop fraction {drop_frac} far from p=0.2"

    print("KERNEL_OK")
</pallas_src>

<mosaic_0001>
module attributes {stable_mosaic.version = 11 : i64} {
  func.func @_pe_eval_kernel(%arg0: i32, %arg1: i32, %arg2: memref<2x256xf32, #tpu.memory_space<vmem>>, %arg3: memref<1x256xf32, #tpu.memory_space<vmem>>, %arg4: memref<2x256xf32, #tpu.memory_space<vmem>>) attributes {dimension_semantics = [#tpu.dimension_semantics<parallel>, #tpu.dimension_semantics<parallel>], iteration_bounds = array<i64: 1, 1>, scalar_prefetch = 0 : i64, scratch_operands = 0 : i64, tpu.core_type = #tpu.core_type<tc>, window_params = [{transform_indices = @transform_0, window_bounds = array<i64: 2, 256>}, {transform_indices = @transform_1, window_bounds = array<i64: 1, 256>}, {transform_indices = @transform_2, window_bounds = array<i64: 2, 256>}]} {
    %c0 = arith.constant 0 : index
    %c0_0 = arith.constant 0 : index
    %0 = vector.load %arg2[%c0, %c0_0] : memref<2x256xf32, #tpu.memory_space<vmem>>, vector<2x256xf32>
    %c0_1 = arith.constant 0 : index
    %c0_2 = arith.constant 0 : index
    %1 = vector.load %arg3[%c0_1, %c0_2] : memref<1x256xf32, #tpu.memory_space<vmem>>, vector<1x256xf32>
    %2 = vector.broadcast %1 : vector<1x256xf32> to vector<2x256xf32>
    %3 = arith.addf %0, %2 : vector<2x256xf32>
    %c0_3 = arith.constant 0 : index
    %c0_4 = arith.constant 0 : index
    %4 = vector.load %arg4[%c0_3, %c0_4] : memref<2x256xf32, #tpu.memory_space<vmem>>, vector<2x256xf32>
    tpu.vector_store %arg4[%c0_3, %c0_4], %3 {strides = array<i32>} : memref<2x256xf32, #tpu.memory_space<vmem>>, vector<2x256xf32>,
    return
  }
  func.func @transform_0(%arg0: i32, %arg1: i32) -> (i32, i32) {
    %c0_i32 = arith.constant 0 : i32
    return %arg1, %arg0 : i32, i32
  }
  func.func @transform_1(%arg0: i32, %arg1: i32) -> (i32, i32) {
    %c0_i32 = arith.constant 0 : i32
    %c0_i32_0 = arith.constant 0 : i32
    return %c0_i32, %arg0 : i32, i32
  }
  func.func @transform_2(%arg0: i32, %arg1: i32) -> (i32, i32) {
    %c0_i32 = arith.constant 0 : i32
    return %arg1, %arg0 : i32, i32
  }
}

</mosaic_0001>

<llo_original>
// kernel: tpu_custom_call.1
$region0: #{tpu_custom_call.1}
  #allocation0 [shape = 'u32[]', space=smem, size = 0x4, offset = 0x4, fixed_abs, tag = 'smem constant byte address 0x4 - core index']
  #allocation1 [shape = 'u32[72,128]{1,0:T(1,128)}', space=vmem, size = 0x9000, scoped, tag = 'internal scratch']
  %s0 = inlined_call_operand.hbm [shape: f32[2,256], index: 0, kind: input, shape index: {}]
  %s1 = inlined_call_operand.hbm [shape: f32[1,256], index: 1, kind: input, shape index: {}]
  %s2 = inlined_call_operand.hbm [shape: f32[2,256], index: 2, kind: output, shape index: {}]
  %s3 = sld [smem:[#allocation0]]
  $region26: #{tpu_custom_call.1} parent=0
    _
  %s5 = ssub.s32 1, %s3
  %s6 = scalar_select 0, %s5, %s3
  $region1: #{tpu_custom_call.1} parent=0
    #allocation2 [shape = 'u8[2048]{0}', space=vmem, size = 0x800, scoped, tag = 'input window, operand 0, single buffered']
    #allocation3 [shape = 's32[1]{0}', space=sflag, size = 0x4, scoped, tag = 'scoped memory for tpu_custom_call.1']
    #allocation4 [shape = 's32[1]{0}', space=sflag, size = 0x4, scoped, tag = 'scoped memory for tpu_custom_call.1']
    #allocation5 [shape = 'u8[1024]{0}', space=vmem, size = 0x400, scoped, tag = 'input window, operand 1, single buffered']
    #allocation6 [shape = 's32[1]{0}', space=sflag, size = 0x4, scoped, tag = 'scoped memory for tpu_custom_call.1']
    #allocation7 [shape = 'u8[2048]{0}', space=vmem, size = 0x800, scoped, tag = 'output window, operand 0, single buffered']
    %7 = vsyncpa [#allocation3], 0
    %8 = vsyncpa [#allocation6], 0
    %9 = vsyncpa [#allocation4], 0
    // Predicated region
    $region2: #{tpu_custom_call.1} parent=1 // pred_check
      _
    $region3: #{tpu_custom_call.1} parent=1 // pred_check_branch
      %11 = sbr.rel (0) target = $region5
    $region4: #{tpu_custom_call.1} parent=1 // pred_region
      %13 = vsyncadd [#allocation3], 0
      %s15 = sshll.u32 %s0, 4
      %s16 = int_to_ptr.hbm [resolvable:$true] %s15
      %s17 = sshll.u32 [#allocation2], 4
      %s18 = int_to_ptr.vmem [resolvable:$true] %s17
      %20 = dma.hbm_to_vmem [thread:$0]  %s16, 64, %s18, [#allocation3]
    $region5: #{tpu_custom_call.1} parent=1 // pred_fallthru
      _
    // Predicated region
    $region6: #{tpu_custom_call.1} parent=1 // pred_check
      _
    $region7: #{tpu_custom_call.1} parent=1 // pred_check_branch
      %22 = sbr.rel (0) target = $region9
    $region8: #{tpu_custom_call.1} parent=1 // pred_region
      %24 = vsyncadd [#allocation6], 0
      %s26 = sshll.u32 %s1, 4
      %s27 = int_to_ptr.hbm [resolvable:$true] %s26
      %s28 = sshll.u32 [#allocation5], 4
      %s29 = int_to_ptr.vmem [resolvable:$true] %s28
      %31 = dma.hbm_to_vmem [thread:$0]  %s27, 32, %s29, [#allocation6]
    $region9: #{tpu_custom_call.1} parent=1 // pred_fallthru
      _
    // Predicated region
    $region10: #{tpu_custom_call.1} parent=1 // pred_check
      _
    $region11: #{tpu_custom_call.1} parent=1 // pred_check_branch
      %33 = sbr.rel (0) target = $region13
    $region12: #{tpu_custom_call.1} parent=1 // pred_region
      %35 = dma.done [#allocation3], 64
    $region13: #{tpu_custom_call.1} parent=1 // pred_fallthru
      _
    // Predicated region
    $region14: #{tpu_custom_call.1} parent=1 // pred_check
      _
    $region15: #{tpu_custom_call.1} parent=1 // pred_check_branch
      %37 = sbr.rel (0) target = $region17
    $region16: #{tpu_custom_call.1} parent=1 // pred_region
      %39 = dma.done [#allocation6], 32
    $region17: #{tpu_custom_call.1} parent=1 // pred_fallthru
      _
    %v40 = vld [vmem:[#allocation2] sm:$0xf]
    %v41 = vld [vmem:[#allocation5] sm:$0x3]
    %v43 = vperm.slane %v41, 0
    %v44 = vperm.slane %v41, 1
    %v45 = vrot.slane %v44, 6
    %vm46 = vcmask 1041408
    %v47 = vsel %vm46, %v43, %v45
    %v49 = vadd.f32 %v40, %v47
    %50 = vst [vmem:[#allocation7] sm:$0xf] %v49
    // Predicated region
    $region18: #{tpu_custom_call.1} parent=1 // pred_check
      _
    $region19: #{tpu_custom_call.1} parent=1 // pred_check_branch
      %52 = sbr.rel (0) target = $region21
    $region20: #{tpu_custom_call.1} parent=1 // pred_region
      %54 = vsyncadd [#allocation4], 0
      %s56 = sshll.u32 [#allocation7], 4
      %s57 = int_to_ptr.vmem [resolvable:$true] %s56
      %s58 = sshll.u32 %s2, 4
      %s59 = int_to_ptr.hbm [resolvable:$true] %s58
      %61 = dma.vmem_to_hbm [thread:$0]  %s57, 64, %s59, [#allocation4]
    $region21: #{tpu_custom_call.1} parent=1 // pred_fallthru
      _
    // Predicated region
    $region22: #{tpu_custom_call.1} parent=1 // pred_check
      _
    $region23: #{tpu_custom_call.1} parent=1 // pred_check_branch
      %63 = sbr.rel (0) target = $region25
    $region24: #{tpu_custom_call.1} parent=1 // pred_region
      %65 = dma.done [#allocation4], 64
    $region25: #{tpu_custom_call.1} parent=1 // pred_fallthru
      _
    %66 = vsyncpa [#allocation3], 1
    %67 = vsyncpa [#allocation6], 1
    %68 = vsyncpa [#allocation4], 1

</llo_original>
